<compile_context>
chip_gen: v6e
topology: v6e:2x2x1
jax: 0.10.0
libtpu: 0.0.40
codegen_flags: <defaults>
</compile_context>

<pallas_src>
import jax
import jax.numpy as jnp
from jax import lax
from jax.experimental import pallas as pl
from jax.experimental.pallas import tpu as pltpu

LANE = 128
_MIB = 1 << 20


def _bitwise_or_kernel(a_ref, b_ref, d_ref):
    # d = a | (a | b) == a | b : single VPU op, one pass over the data.
    d_ref[...] = jnp.bitwise_or(a_ref[...], b_ref[...])


def _round_up(x, m):
    return ((x + m - 1) // m) * m


def _default_max_tile_rows():
    # 4 MiB blocks pay off on v6e/v7x (>=1.3 TB/s HBM -> per-step overhead is a
    # visible fraction of a 2 MiB step).  Keep 2 MiB blocks elsewhere so
    # 6 live buffers (12 MiB) stay under v5e's 16 MiB scoped-VMEM default.
    try:
        kind = jax.devices()[0].device_kind.lower()
    except Exception:
        kind = ""
    if ("v6" in kind) or ("v7" in kind) or ("7x" in kind):
        return 8192
    return 4096


def _pick_tiling(rows, sublane_align, max_tile_rows):
    """Rows-per-block and grid length for a streaming elementwise kernel.

    Goals (in order): block rows a multiple of the dtype's sublane tile,
    block <= max_tile_rows, and -- whenever blocks can stay >= 512 rows --
    at least 6 blocks total (>= 3 per TensorCore on v7x) with an even count so
    both cores get equal work and writeback of block i-1 overlaps fetch of i+1.
    """
    rows_aligned = _round_up(rows, sublane_align)
    nb = pl.cdiv(rows, max_tile_rows)            # blocks forced by VMEM budget
    if rows >= 6 * 512:
        nb = max(nb, 6)
    elif rows >= 2 * 512:
        nb = max(nb, 2)
    if nb > 1 and nb % 2:
        nb += 1                                  # even split across 2 TCs
    tile_rows = _round_up(pl.cdiv(rows, nb), sublane_align)
    tile_rows = max(sublane_align, min(tile_rows, min(max_tile_rows, rows_aligned)))
    grid_len = pl.cdiv(rows, tile_rows)
    return tile_rows, grid_len


def bitwise_or_module(a, b, *, max_tile_rows=None, donate_a=False):
    """Computes d = a | (a | b) (== a | b), matching SimpleBitwiseOrModule.forward."""
    assert a.shape == b.shape and a.dtype == b.dtype
    assert jnp.issubdtype(a.dtype, jnp.integer) or a.dtype == jnp.bool_, (
        "bitwise_or is only defined for integer/bool dtypes"
    )
    orig_shape = a.shape
    orig_dtype = a.dtype
    n = a.size
    if n == 0:
        return a

    if max_tile_rows is None:
        max_tile_rows = _default_max_tile_rows()

    a_flat = a.reshape(-1)   # contiguous reshape: free, no copy
    b_flat = b.reshape(-1)

    # Sub-32-bit integer dtypes: bit-pack 4x int8 / 2x int16 into one uint32
    # lane (bitwise OR is bit-pattern exact) so the kernel runs on the native
    # 32-bit (8,128) tile and avoids packed-sublane relayouts.
    itemsize = a_flat.dtype.itemsize
    packed = False
    pack_ratio = 4 // itemsize
    if orig_dtype != jnp.bool_ and itemsize < 4 and n % pack_ratio == 0:
        a_flat = lax.bitcast_convert_type(a_flat.reshape(-1, pack_ratio), jnp.uint32)
        b_flat = lax.bitcast_convert_type(b_flat.reshape(-1, pack_ratio), jnp.uint32)
        packed = True

    kdtype = a_flat.dtype
    n_k = a_flat.size
    itemsize_k = a_flat.dtype.itemsize
    # Native sublane tile: (8,128) 32-bit, (16,128) 16-bit, (32,128) 8-bit/bool.
    sublane_align = {1: 32, 2: 16, 4: 8}[itemsize_k]

    rows = pl.cdiv(n_k, LANE)
    tile_rows, grid_len = _pick_tiling(rows, sublane_align, max_tile_rows)

    block_bytes = tile_rows * LANE * itemsize_k
    # 3 arrays x 2 pipeline buffers live at once; only raise the scoped-VMEM
    # limit when that would overshoot the smallest default (v5e: 16 MiB).
    vmem_need = 6 * block_bytes + 8 * _MIB
    vmem_limit = int(min(vmem_need, 56 * _MIB)) if vmem_need > 16 * _MIB else None
    compiler_params = pltpu.CompilerParams(
        dimension_semantics=("parallel",),
        vmem_limit_bytes=vmem_limit,
    )
    cost = pl.CostEstimate(flops=n_k, transcendentals=0,
                           bytes_accessed=3 * n_k * itemsize_k)
    io_alias = {0: 0} if donate_a else {}   # output d aliases donated input a

    if n_k % LANE == 0:
        # Common case: lane-dense 2-D view, zero padding / zero extra copies.
        a2 = a_flat.reshape(rows, LANE)
        b2 = b_flat.reshape(rows, LANE)
        d2 = pl.pallas_call(
            _bitwise_or_kernel,
            out_shape=jax.ShapeDtypeStruct((rows, LANE), kdtype),
            grid_spec=pltpu.PrefetchScalarGridSpec(
                num_scalar_prefetch=0,
                grid=(grid_len,),
                in_specs=[
                    pl.BlockSpec((tile_rows, LANE), lambda i: (i, 0)),
                    pl.BlockSpec((tile_rows, LANE), lambda i: (i, 0)),
                ],
                out_specs=pl.BlockSpec((tile_rows, LANE), lambda i: (i, 0)),
            ),
            compiler_params=compiler_params,
            cost_estimate=cost,
            input_output_aliases=io_alias,
        )(a2, b2)
        d_flat = d2.reshape(-1)
    else:
        # Unaligned flat size: stay 1-D and let Pallas mask the partial last
        # block (block_shape is a multiple of 128; the array needn't be).
        # No jnp.pad / output slice -> no extra full-array HBM passes.
        tile_elems = tile_rows * LANE
        d_flat = pl.pallas_call(
            _bitwise_or_kernel,
            out_shape=jax.ShapeDtypeStruct((n_k,), kdtype),
            grid_spec=pltpu.PrefetchScalarGridSpec(
                num_scalar_prefetch=0,
                grid=(pl.cdiv(n_k, tile_elems),),
                in_specs=[
                    pl.BlockSpec((tile_elems,), lambda i: (i,)),
                    pl.BlockSpec((tile_elems,), lambda i: (i,)),
                ],
                out_specs=pl.BlockSpec((tile_elems,), lambda i: (i,)),
            ),
            compiler_params=compiler_params,
            cost_estimate=cost,
            input_output_aliases=io_alias,
        )(a_flat, b_flat)

    if packed:
        d_flat = lax.bitcast_convert_type(d_flat, orig_dtype).reshape(-1)
    return d_flat.reshape(orig_shape)


if __name__ == "__main__":
    key = jax.random.PRNGKey(0)
    ka, kb = jax.random.split(key)
    shape = (2, 4, 16, 16)
    a = jax.random.randint(ka, shape, minval=-128, maxval=128, dtype=jnp.int32)
    b = jax.random.randint(kb, shape, minval=-128, maxval=128, dtype=jnp.int32)

    d = bitwise_or_module(a, b)
    d = jax.block_until_ready(d)

    # Reference check against plain JAX semantics of the PyTorch module.
    ref = jnp.bitwise_or(a, jnp.bitwise_or(a, b))
    assert d.shape == shape and d.dtype == a.dtype
    assert bool(jnp.all(d == ref))
    print("KERNEL_OK")
</pallas_src>

<mosaic_0001>
module attributes {stable_mosaic.version = 11 : i64} {
  func.func @_bitwise_or_kernel(%arg0: i32, %arg1: memref<16x128xi32, #tpu.memory_space<vmem>>, %arg2: memref<16x128xi32, #tpu.memory_space<vmem>>, %arg3: memref<16x128xi32, #tpu.memory_space<vmem>>) attributes {dimension_semantics = [#tpu.dimension_semantics<parallel>], iteration_bounds = array<i64: 1>, scalar_prefetch = 0 : i64, scratch_operands = 0 : i64, tpu.core_type = #tpu.core_type<tc>, window_params = [{transform_indices = @transform_0, window_bounds = array<i64: 16, 128>}, {transform_indices = @transform_1, window_bounds = array<i64: 16, 128>}, {transform_indices = @transform_2, window_bounds = array<i64: 16, 128>}]} {
    %c0 = arith.constant 0 : index
    %c0_0 = arith.constant 0 : index
    %0 = vector.load %arg1[%c0, %c0_0] : memref<16x128xi32, #tpu.memory_space<vmem>>, vector<16x128xi32>
    %c0_1 = arith.constant 0 : index
    %c0_2 = arith.constant 0 : index
    %1 = vector.load %arg2[%c0_1, %c0_2] : memref<16x128xi32, #tpu.memory_space<vmem>>, vector<16x128xi32>
    %2 = arith.ori %0, %1 : vector<16x128xi32>
    %c0_3 = arith.constant 0 : index
    %c0_4 = arith.constant 0 : index
    %3 = vector.load %arg3[%c0_3, %c0_4] : memref<16x128xi32, #tpu.memory_space<vmem>>, vector<16x128xi32>
    tpu.vector_store %arg3[%c0_3, %c0_4], %2 {strides = array<i32>} : memref<16x128xi32, #tpu.memory_space<vmem>>, vector<16x128xi32>,
    return
  }
  func.func @transform_0(%arg0: i32) -> (i32, i32) {
    %c0_i32 = arith.constant 0 : i32
    %c0_i32_0 = arith.constant 0 : i32
    return %arg0, %c0_i32 : i32, i32
  }
  func.func @transform_1(%arg0: i32) -> (i32, i32) {
    %c0_i32 = arith.constant 0 : i32
    %c0_i32_0 = arith.constant 0 : i32
    return %arg0, %c0_i32 : i32, i32
  }
  func.func @transform_2(%arg0: i32) -> (i32, i32) {
    %c0_i32 = arith.constant 0 : i32
    %c0_i32_0 = arith.constant 0 : i32
    return %arg0, %c0_i32 : i32, i32
  }
}

</mosaic_0001>

<llo_original>
// kernel: tpu_custom_call.1
$region0: #{tpu_custom_call.1}
  #allocation0 [shape = 'u32[]', space=smem, size = 0x4, offset = 0x4, fixed_abs, tag = 'smem constant byte address 0x4 - core index']
  #allocation1 [shape = 'u32[144,128]{1,0:T(1,128)}', space=vmem, size = 0x12000, scoped, tag = 'internal scratch']
  %s0 = inlined_call_operand.hbm [shape: s32[16,128], index: 0, kind: input, shape index: {}]
  %s1 = inlined_call_operand.hbm [shape: s32[16,128], index: 1, kind: input, shape index: {}]
  %s2 = inlined_call_operand.hbm [shape: s32[16,128], index: 2, kind: output, shape index: {}]
  %s3 = sld [smem:[#allocation0]]
  $region26: #{tpu_custom_call.1} parent=0
    _
  %s5 = ssub.s32 1, %s3
  %s6 = scalar_select 0, %s5, %s3
  $region1: #{tpu_custom_call.1} parent=0
    #allocation2 [shape = 'u8[8192]{0}', space=vmem, size = 0x2000, scoped, tag = 'input window, operand 0, single buffered']
    #allocation3 [shape = 's32[1]{0}', space=sflag, size = 0x4, scoped, tag = 'scoped memory for tpu_custom_call.1']
    #allocation4 [shape = 's32[1]{0}', space=sflag, size = 0x4, scoped, tag = 'scoped memory for tpu_custom_call.1']
    #allocation5 [shape = 'u8[8192]{0}', space=vmem, size = 0x2000, scoped, tag = 'input window, operand 1, single buffered']
    #allocation6 [shape = 's32[1]{0}', space=sflag, size = 0x4, scoped, tag = 'scoped memory for tpu_custom_call.1']
    #allocation7 [shape = 'u8[8192]{0}', space=vmem, size = 0x2000, scoped, tag = 'output window, operand 0, single buffered']
    %7 = vsyncpa [#allocation3], 0
    %8 = vsyncpa [#allocation6], 0
    %9 = vsyncpa [#allocation4], 0
    // Predicated region
    $region2: #{tpu_custom_call.1} parent=1 // pred_check
      _
    $region3: #{tpu_custom_call.1} parent=1 // pred_check_branch
      %11 = sbr.rel (0) target = $region5
    $region4: #{tpu_custom_call.1} parent=1 // pred_region
      %s13 = ssub.s32 256, 256
      %14 = vsyncadd [#allocation3], %s13
      %s15 = sshll.u32 [#allocation2], 4
      %s16 = int_to_ptr.vmem [resolvable:$true] %s15
      %21 = dma.hbm_to_vmem [thread:$0]  %s0, 256, %s16, [#allocation3], 128, 128, 8
    $region5: #{tpu_custom_call.1} parent=1 // pred_fallthru
      _
    // Predicated region
    $region6: #{tpu_custom_call.1} parent=1 // pred_check
      _
    $region7: #{tpu_custom_call.1} parent=1 // pred_check_branch
      %23 = sbr.rel (0) target = $region9
    $region8: #{tpu_custom_call.1} parent=1 // pred_region
      %s25 = ssub.s32 256, 256
      %26 = vsyncadd [#allocation6], %s25
      %s27 = sshll.u32 [#allocation5], 4
      %s28 = int_to_ptr.vmem [resolvable:$true] %s27
      %33 = dma.hbm_to_vmem [thread:$0]  %s1, 256, %s28, [#allocation6], 128, 128, 8
    $region9: #{tpu_custom_call.1} parent=1 // pred_fallthru
      _
    // Predicated region
    $region10: #{tpu_custom_call.1} parent=1 // pred_check
      _
    $region11: #{tpu_custom_call.1} parent=1 // pred_check_branch
      %35 = sbr.rel (0) target = $region13
    $region12: #{tpu_custom_call.1} parent=1 // pred_region
      %36 = dma.done [#allocation3], 256
    $region13: #{tpu_custom_call.1} parent=1 // pred_fallthru
      _
    // Predicated region
    $region14: #{tpu_custom_call.1} parent=1 // pred_check
      _
    $region15: #{tpu_custom_call.1} parent=1 // pred_check_branch
      %38 = sbr.rel (0) target = $region17
    $region16: #{tpu_custom_call.1} parent=1 // pred_region
      %39 = dma.done [#allocation6], 256
    $region17: #{tpu_custom_call.1} parent=1 // pred_fallthru
      _
    %v40 = vld [vmem:[#allocation2] sm:$0xff]
    %v41 = vld [vmem:[#allocation2 + $0x8] sm:$0xff]
    %v42 = vld [vmem:[#allocation5] sm:$0xff]
    %v43 = vld [vmem:[#allocation5 + $0x8] sm:$0xff]
    %v44 = vor.u32 %v40, %v42
    %v45 = vor.u32 %v41, %v43
    %46 = vst [vmem:[#allocation7] sm:$0xff] %v44
    %47 = vst [vmem:[#allocation7 + $0x8] sm:$0xff] %v45
    // Predicated region
    $region18: #{tpu_custom_call.1} parent=1 // pred_check
      _
    $region19: #{tpu_custom_call.1} parent=1 // pred_check_branch
      %49 = sbr.rel (0) target = $region21
    $region20: #{tpu_custom_call.1} parent=1 // pred_region
      %s51 = ssub.s32 256, 256
      %52 = vsyncadd [#allocation4], %s51
      %s53 = sshll.u32 [#allocation7], 4
      %s54 = int_to_ptr.vmem [resolvable:$true] %s53
      %59 = dma.vmem_to_hbm [thread:$0]  %s54, 256, %s2, [#allocation4], 128, 128, 8
    $region21: #{tpu_custom_call.1} parent=1 // pred_fallthru
      _
    // Predicated region
    $region22: #{tpu_custom_call.1} parent=1 // pred_check
      _
    $region23: #{tpu_custom_call.1} parent=1 // pred_check_branch
      %61 = sbr.rel (0) target = $region25
    $region24: #{tpu_custom_call.1} parent=1 // pred_region
      %62 = dma.done [#allocation4], 256
    $region25: #{tpu_custom_call.1} parent=1 // pred_fallthru
      _
    %63 = vsyncpa [#allocation3], 1
    %64 = vsyncpa [#allocation6], 1
    %65 = vsyncpa [#allocation4], 1

</llo_original>
